<compile_context>
chip_gen: v7x
topology: tpu7x:2x2x1
jax: 0.10.0
libtpu: 0.0.40
codegen_flags: <defaults>
</compile_context>

<pallas_src>
import functools
import math

import jax
import jax.numpy as jnp
from jax import lax
from jax.experimental import pallas as pl
from jax.experimental.pallas import tpu as pltpu


# --------------------------------------------------------------------------
# Kernel body
# --------------------------------------------------------------------------
def _encoder_image_kernel(x_ref, w_ref, b_ref, o_ref, *, normalize, fast_norm, eps):
    """Fused FC + bias (+ per-row L2 normalization) on one tile of rows.

    x_ref: (tm, D)   VMEM row tile of flattened images (MXU feed dtype)
    w_ref: (D, E)    VMEM-resident weight (torch weight transposed)
    b_ref: (1, E)    VMEM-resident bias
    o_ref: (tm, E)   VMEM output tile
    """
    # Feed the MXU the stored dtype; accumulate in f32.
    emb = jnp.dot(x_ref[...], w_ref[...], preferred_element_type=jnp.float32)
    emb = emb + b_ref[...].astype(jnp.float32)

    if normalize:
        # Per-row sum of squares on the (tm, 1) column; everything stays per-row,
        # which is what makes the unpadded partial last block safe.
        ss = jnp.sum(emb * emb, axis=-1, keepdims=True)
        if fast_norm:
            # One EUP op; eps moves inside the sqrt (X / sqrt(ss + eps^2)).
            emb = emb * lax.rsqrt(ss + eps * eps)
        else:
            # Exact PyTorch l2norm: X / (sqrt(ss) + eps).  Exact reciprocal keeps
            # numerical parity with the reference module.
            norm = jnp.sqrt(ss) + eps
            emb = emb * pl.reciprocal(norm, approx=False)

    o_ref[...] = emb.astype(o_ref.dtype)


# --------------------------------------------------------------------------
# Wrapper
# --------------------------------------------------------------------------
def _round_up(x, m):
    return ((x + m - 1) // m) * m


def _sublane_packing(dtype):
    nbytes = jnp.dtype(dtype).itemsize
    return {4: 8, 2: 16, 1: 32}.get(nbytes, 8)


def _choose_tm(M, tm, packing, min_grid_steps):
    tm_eff = _round_up(max(1, min(tm, M)), packing)
    if tm_eff > M and M >= packing:
        # Prefer an in-bounds tile with a partial trailing block over a single
        # block that overhangs the array.
        tm_eff = (M // packing) * packing
    if min_grid_steps > 1 and M >= min_grid_steps * packing:
        # v7x (2 TCs over the "parallel" axis): guarantee >= min_grid_steps steps.
        tm_eff = min(tm_eff, _round_up(pl.cdiv(M, min_grid_steps), packing))
    return max(tm_eff, packing)


def _vmem_limit_bytes(tm, D, E, x_bytes, w_bytes, o_bytes):
    need = (
        2 * tm * D * x_bytes          # x tile, double-buffered
        + (D * E + E) * w_bytes       # weight + bias, single-buffered
        + 2 * tm * E * o_bytes        # output tile, double-buffered
        + tm * E * 4                  # f32 embedding temp (norm epilogue)
        + tm * 8 * 4                  # per-row norm column + slack
    )
    limit = int(need * 1.5) + (8 << 20)   # headroom for Mosaic internal scratch
    cap = 100 << 20
    try:
        cap = int(pltpu.get_tpu_info().vmem_capacity_bytes * 0.9)
    except Exception:
        pass
    return max(32 << 20, min(limit, cap))


def encoder_image_forward(images, weight_t, bias, *, tm=512, no_imgnorm=False,
                          fast_norm=False, eps=1e-8, min_grid_steps=1,
                          vmem_limit_bytes=None):
    """images: (B, R, D); weight_t: (D, E) = torch weight.T; bias: (E,)."""
    B, R, D = images.shape
    E = weight_t.shape[1]
    M = B * R

    x2d = images.reshape(M, D)
    # Production path: bf16 MXU feed (f32 accumulation stays inside the kernel).
    if weight_t.dtype == jnp.bfloat16 and x2d.dtype != jnp.bfloat16:
        x2d = x2d.astype(jnp.bfloat16)
    bias2d = bias.reshape(1, E).astype(weight_t.dtype)

    x_bytes = jnp.dtype(x2d.dtype).itemsize
    w_bytes = jnp.dtype(weight_t.dtype).itemsize
    o_bytes = jnp.dtype(images.dtype).itemsize

    packing = max(_sublane_packing(x2d.dtype), _sublane_packing(images.dtype))
    tm_eff = _choose_tm(M, tm, packing, min_grid_steps)
    grid = (pl.cdiv(M, tm_eff),)

    if vmem_limit_bytes is None:
        vmem_limit_bytes = _vmem_limit_bytes(tm_eff, D, E, x_bytes, w_bytes, o_bytes)

    normalize = not no_imgnorm
    transcendentals = 0 if no_imgnorm else (M if fast_norm else 2 * M)
    cost = pl.CostEstimate(
        flops=2 * M * D * E,
        transcendentals=transcendentals,
        bytes_accessed=M * D * x_bytes + (D * E + E) * w_bytes + M * E * o_bytes,
    )

    kernel = functools.partial(
        _encoder_image_kernel, normalize=normalize, fast_norm=fast_norm, eps=eps)

    out2d = pl.pallas_call(
        kernel,
        out_shape=jax.ShapeDtypeStruct((M, E), images.dtype),
        grid_spec=pltpu.PrefetchScalarGridSpec(
            num_scalar_prefetch=0,
            grid=grid,
            in_specs=[
                # Row tile of images: pipelined (double-buffered by default).
                pl.BlockSpec((tm_eff, D), lambda i: (i, 0)),
                # Whole weight, constant index -> VMEM-resident; single-buffer.
                pl.BlockSpec((D, E), lambda i: (0, 0),
                             pipeline_mode=pl.Buffered(buffer_count=1)),
                # Bias, resident; single-buffer.
                pl.BlockSpec((1, E), lambda i: (0, 0),
                             pipeline_mode=pl.Buffered(buffer_count=1)),
            ],
            out_specs=pl.BlockSpec((tm_eff, E), lambda i: (i, 0)),
        ),
        compiler_params=pltpu.CompilerParams(
            dimension_semantics=("parallel",),
            vmem_limit_bytes=int(vmem_limit_bytes),
        ),
        cost_estimate=cost,
    )(x2d, weight_t, bias2d)

    return out2d.reshape(B, R, E)


# --------------------------------------------------------------------------
# Params (matches EncoderImage.init_weights)
# --------------------------------------------------------------------------
def init_encoder_image_params(key, img_dim, embed_size, dtype=jnp.bfloat16):
    """Xavier-uniform init matching EncoderImage.init_weights().

    Default dtype is bf16 (production MXU feed); pass dtype=jnp.float32 for
    exact-parity testing.  torch weight is (embed, img_dim); we store its
    transpose (img_dim, embed) so the kernel runs x @ W_t directly.
    """
    r = math.sqrt(6.0) / math.sqrt(img_dim + embed_size)
    weight_t = jax.random.uniform(
        key, (img_dim, embed_size), dtype=jnp.float32, minval=-r, maxval=r
    ).astype(dtype)
    bias = jnp.zeros((embed_size,), dtype=dtype)
    return weight_t, bias


# --------------------------------------------------------------------------
# Pure-JAX reference (PyTorch semantics)
# --------------------------------------------------------------------------
def _reference(images, weight_t, bias, no_imgnorm=False, eps=1e-8):
    x = images.astype(jnp.float32)
    w = weight_t.astype(jnp.float32)
    emb = jnp.einsum("brd,de->bre", x, w,
                     precision=lax.Precision.HIGHEST) + bias.astype(jnp.float32)
    if not no_imgnorm:
        norm = jnp.sqrt(jnp.sum(emb * emb, axis=-1, keepdims=True)) + eps
        emb = emb / norm
    return emb


if __name__ == "__main__":
    key = jax.random.PRNGKey(0)
    k_img, k_w, k_b = jax.random.split(key, 3)

    # Small but layout-realistic shapes: 36 regions per image; lane dims are
    # multiples of 128 so the (8,128) tiling / lane-dense store paths are hit.
    batch, regions, img_dim, embed_size = 2, 36, 256, 128

    images = jax.random.normal(k_img, (batch, regions, img_dim), dtype=jnp.float32)
    weight_t, bias = init_encoder_image_params(k_w, img_dim, embed_size,
                                               dtype=jnp.float32)
    # Non-zero bias so the bias path is actually exercised (module inits it to 0).
    bias = bias + 0.01 * jax.random.normal(k_b, (embed_size,), dtype=jnp.float32)

    ref = _reference(images, weight_t, bias)

    # 1) Default config (f32 parity path, exact norm): single full tile, no pad.
    out = encoder_image_forward(images, weight_t, bias)
    jax.block_until_ready(out)
    assert out.shape == (batch, regions, embed_size)
    assert jnp.allclose(out, ref, atol=1e-3, rtol=1e-3), "normalized path mismatch"

    # 2) Small explicit tile: 72 rows -> grid steps [32, 32, 8]; exercises the
    #    unpadded partial last block (masked store, no host pad/slice).
    out_tiled = encoder_image_forward(images, weight_t, bias, tm=32)
    jax.block_until_ready(out_tiled)
    assert jnp.allclose(out_tiled, ref, atol=1e-3, rtol=1e-3), "tiled path mismatch"

    # 3) Forced >=2 grid steps (v7x-style 2-TC sharding of the parallel axis).
    out_2tc = encoder_image_forward(images, weight_t, bias, min_grid_steps=2)
    jax.block_until_ready(out_2tc)
    assert jnp.allclose(out_2tc, ref, atol=1e-3, rtol=1e-3), "min_grid_steps mismatch"

    # 4) no_imgnorm=True path (skip the L2 norm).
    out_raw = encoder_image_forward(images, weight_t, bias, no_imgnorm=True)
    jax.block_until_ready(out_raw)
    ref_raw = _reference(images, weight_t, bias, no_imgnorm=True)
    assert jnp.allclose(out_raw, ref_raw, atol=1e-3, rtol=1e-3), "no_imgnorm mismatch"

    # 5) fast_norm=True: fused rsqrt epilogue (eps placement differs slightly).
    out_fast = encoder_image_forward(images, weight_t, bias, fast_norm=True)
    jax.block_until_ready(out_fast)
    assert jnp.allclose(out_fast, ref, atol=2e-3, rtol=2e-3), "fast_norm mismatch"

    # 6) Production dtype: bf16 weights (init default); wrapper casts the f32
    #    activations to bf16 for the MXU, output stays in the input dtype.
    weight_bf16, bias_bf16 = init_encoder_image_params(k_w, img_dim, embed_size)
    bias_bf16 = (bias_bf16.astype(jnp.float32)
                 + 0.01 * jax.random.normal(k_b, (embed_size,),
                                            dtype=jnp.float32)).astype(jnp.bfloat16)
    out_bf16 = encoder_image_forward(images, weight_bf16, bias_bf16)
    jax.block_until_ready(out_bf16)
    ref_bf16 = _reference(images.astype(jnp.bfloat16), weight_bf16, bias_bf16)
    assert jnp.allclose(out_bf16.astype(jnp.float32), ref_bf16,
                        atol=3e-2, rtol=3e-2), "bf16 path mismatch"

    print("KERNEL_OK")
</pallas_src>

<mosaic_0001>
module attributes {stable_mosaic.version = 11 : i64} {
  func.func @_encoder_image_kernel(%arg0: i32, %arg1: memref<72x256xf32, #tpu.memory_space<vmem>>, %arg2: memref<256x128xf32, #tpu.memory_space<vmem>>, %arg3: memref<1x128xf32, #tpu.memory_space<vmem>>, %arg4: memref<72x128xf32, #tpu.memory_space<vmem>>) attributes {dimension_semantics = [#tpu.dimension_semantics<parallel>], iteration_bounds = array<i64: 1>, scalar_prefetch = 0 : i64, scratch_operands = 0 : i64, tpu.core_type = #tpu.core_type<tc>, window_params = [{transform_indices = @transform_0, window_bounds = array<i64: 72, 256>}, {pipeline_mode = #tpu.pipeline_mode<synchronous>, transform_indices = @transform_1, window_bounds = array<i64: 256, 128>}, {pipeline_mode = #tpu.pipeline_mode<synchronous>, transform_indices = @transform_2, window_bounds = array<i64: 1, 128>}, {transform_indices = @transform_3, window_bounds = array<i64: 72, 128>}]} {
    %c0 = arith.constant 0 : index
    %c0_0 = arith.constant 0 : index
    %0 = vector.load %arg1[%c0, %c0_0] : memref<72x256xf32, #tpu.memory_space<vmem>>, vector<72x256xf32>
    %c0_1 = arith.constant 0 : index
    %c0_2 = arith.constant 0 : index
    %1 = vector.load %arg2[%c0_1, %c0_2] : memref<256x128xf32, #tpu.memory_space<vmem>>, vector<256x128xf32>
    %cst = arith.constant dense<0.000000e+00> : vector<72x128xf32>
    %2 = tpu.matmul %0, %1, %cst {dimension_numbers = #tpu.dot_dimension_numbers<[1], [0], [0], [1], [0, 0, 1, 1], [], []>} : vector<72x256xf32>, vector<256x128xf32>, vector<72x128xf32> -> vector<72x128xf32>
    %c0_3 = arith.constant 0 : index
    %c0_4 = arith.constant 0 : index
    %3 = vector.load %arg3[%c0_3, %c0_4] : memref<1x128xf32, #tpu.memory_space<vmem>>, vector<1x128xf32>
    %4 = vector.broadcast %3 : vector<1x128xf32> to vector<72x128xf32>
    %5 = arith.addf %2, %4 : vector<72x128xf32>
    %6 = arith.mulf %5, %5 : vector<72x128xf32>
    %cst_5 = arith.constant dense<0.000000e+00> : vector<72xf32>
    %7 = vector.multi_reduction <add>, %6, %cst_5 [1] : vector<72x128xf32> to vector<72xf32>
    %8 = vector.shape_cast %7 : vector<72xf32> to vector<72x1xf32>
    %9 = math.sqrt %8 : vector<72x1xf32>
    %cst_6 = arith.constant 9.99999993E-9 : f32
    %10 = vector.broadcast %cst_6 : f32 to vector<72x1xf32>
    %11 = arith.addf %9, %10 : vector<72x1xf32>
    %12 = tpu.reciprocal %11 : vector<72x1xf32> -> vector<72x1xf32>
    %13 = vector.broadcast %12 : vector<72x1xf32> to vector<72x128xf32>
    %14 = arith.mulf %5, %13 : vector<72x128xf32>
    %c0_7 = arith.constant 0 : index
    %c0_8 = arith.constant 0 : index
    %15 = vector.load %arg4[%c0_7, %c0_8] : memref<72x128xf32, #tpu.memory_space<vmem>>, vector<72x128xf32>
    tpu.vector_store %arg4[%c0_7, %c0_8], %14 {strides = array<i32>} : memref<72x128xf32, #tpu.memory_space<vmem>>, vector<72x128xf32>,
    return
  }
  func.func @transform_0(%arg0: i32) -> (i32, i32) {
    %c0_i32 = arith.constant 0 : i32
    %c0_i32_0 = arith.constant 0 : i32
    return %arg0, %c0_i32 : i32, i32
  }
  func.func @transform_1(%arg0: i32) -> (i32, i32) {
    %c0_i32 = arith.constant 0 : i32
    %c0_i32_0 = arith.constant 0 : i32
    %c0_i32_1 = arith.constant 0 : i32
    return %c0_i32, %c0_i32_0 : i32, i32
  }
  func.func @transform_2(%arg0: i32) -> (i32, i32) {
    %c0_i32 = arith.constant 0 : i32
    %c0_i32_0 = arith.constant 0 : i32
    %c0_i32_1 = arith.constant 0 : i32
    return %c0_i32, %c0_i32_0 : i32, i32
  }
  func.func @transform_3(%arg0: i32) -> (i32, i32) {
    %c0_i32 = arith.constant 0 : i32
    %c0_i32_0 = arith.constant 0 : i32
    return %arg0, %c0_i32 : i32, i32
  }
}

</mosaic_0001>

<llo_original>
// kernel: tpu_custom_call.1
$region0: #{tpu_custom_call.1}
  #allocation0 [shape = 'u32[]', space=smem, size = 0x4, offset = 0x4, fixed_abs, tag = 'smem constant byte address 0x4 - core index']
  #allocation1 [shape = 'u32[144,128]{1,0:T(1,128)}', space=vmem, size = 0x12000, scoped, tag = 'internal scratch']
  %s0 = inlined_call_operand.hbm [shape: f32[72,256], index: 0, kind: input, shape index: {}]
  %s1 = inlined_call_operand.hbm [shape: f32[256,128], index: 1, kind: input, shape index: {}]
  %s2 = inlined_call_operand.vmem [shape: f32[1,128], index: 2, kind: input, shape index: {}]
  %s3 = inlined_call_operand.hbm [shape: f32[72,128], index: 3, kind: output, shape index: {}]
  %s4 = sld [smem:[#allocation0]]
  $region30: #{tpu_custom_call.1} parent=0
    _
  %s6 = ssub.s32 1, %s4
  %s7 = scalar_select 0, %s6, %s4
  $region1: #{tpu_custom_call.1} parent=0
    #allocation2 [shape = 'u8[73728]{0}', space=vmem, size = 0x12000, scoped, tag = 'input window, operand 0, single buffered']
    #allocation3 [shape = 's32[1]{0}', space=sflag, size = 0x4, scoped, tag = 'scoped memory for tpu_custom_call.1']
    #allocation4 [shape = 's32[1]{0}', space=sflag, size = 0x4, scoped, tag = 'scoped memory for tpu_custom_call.1']
    #allocation5 [shape = 'u8[131072]{0}', space=vmem, size = 0x20000, scoped, tag = 'input window, operand 1, single buffered']
    #allocation6 [shape = 's32[1]{0}', space=sflag, size = 0x4, scoped, tag = 'scoped memory for tpu_custom_call.1']
    #allocation7 [shape = 'u8[36864]{0}', space=vmem, size = 0x9000, scoped, tag = 'output window, operand 0, single buffered']
    %8 = vsyncpa [#allocation3], 0
    %9 = vsyncpa [#allocation6], 0
    %10 = vsyncpa [#allocation4], 0
    // Predicated region
    $region2: #{tpu_custom_call.1} parent=1 // pred_check
      _
    $region3: #{tpu_custom_call.1} parent=1 // pred_check_branch
      %12 = sbr.rel (0) target = $region5
    $region4: #{tpu_custom_call.1} parent=1 // pred_region
      %s14 = ssub.s32 2304, 2304
      %15 = vsyncadd [#allocation3], %s14
      %s16 = sshll.u32 [#allocation2], 4
      %s17 = int_to_ptr.vmem [resolvable:$true] %s16
      %22 = dma.hbm_to_vmem [thread:$0]  %s0, 2304, %s17, [#allocation3], 256, 256, 16
    $region5: #{tpu_custom_call.1} parent=1 // pred_fallthru
      _
    // Predicated region
    $region6: #{tpu_custom_call.1} parent=1 // pred_check
      _
    $region7: #{tpu_custom_call.1} parent=1 // pred_check_branch
      %24 = sbr.rel (0) target = $region9
    $region8: #{tpu_custom_call.1} parent=1 // pred_region
      %s26 = ssub.s32 4096, 4096
      %27 = vsyncadd [#allocation6], %s26
      %s28 = sshll.u32 [#allocation5], 4
      %s29 = int_to_ptr.vmem [resolvable:$true] %s28
      %34 = dma.hbm_to_vmem [thread:$0]  %s1, 4096, %s29, [#allocation6], 128, 128, 8
    $region9: #{tpu_custom_call.1} parent=1 // pred_fallthru
      _
    // Predicated region
    $region10: #{tpu_custom_call.1} parent=1 // pred_check
      _
    $region11: #{tpu_custom_call.1} parent=1 // pred_check_branch
      %36 = sbr.rel (0) target = $region13
    $region12: #{tpu_custom_call.1} parent=1 // pred_region
      _
    $region13: #{tpu_custom_call.1} parent=1 // pred_fallthru
      _
    // Predicated region
    $region14: #{tpu_custom_call.1} parent=1 // pred_check
      _
    $region15: #{tpu_custom_call.1} parent=1 // pred_check_branch
      %38 = sbr.rel (0) target = $region17
    $region16: #{tpu_custom_call.1} parent=1 // pred_region
      %39 = dma.done [#allocation3], 2304
    $region17: #{tpu_custom_call.1} parent=1 // pred_fallthru
      _
    // Predicated region
    $region18: #{tpu_custom_call.1} parent=1 // pred_check
      _
    $region19: #{tpu_custom_call.1} parent=1 // pred_check_branch
      %41 = sbr.rel (0) target = $region21
    $region20: #{tpu_custom_call.1} parent=1 // pred_region
      %42 = dma.done [#allocation6], 4096
    $region21: #{tpu_custom_call.1} parent=1 // pred_fallthru
      _
    %v43 = vld [vmem:[#allocation2] sm:$0xff]
    %v44 = vld [vmem:[#allocation2 + $0x8] sm:$0xff]
    %v45 = vld [vmem:[#allocation2 + $0x10] sm:$0xff]
    %v46 = vld [vmem:[#allocation2 + $0x18] sm:$0xff]
    %v47 = vld [vmem:[#allocation2 + $0x20] sm:$0xff]
    %v48 = vld [vmem:[#allocation2 + $0x28] sm:$0xff]
    %v49 = vld [vmem:[#allocation2 + $0x30] sm:$0xff]
    %v50 = vld [vmem:[#allocation2 + $0x38] sm:$0xff]
    %v51 = vld [vmem:[#allocation2 + $0x40] sm:$0xff]
    %v52 = vld [vmem:[#allocation2 + $0x48] sm:$0xff]
    %v53 = vld [vmem:[#allocation2 + $0x50] sm:$0xff]
    %v54 = vld [vmem:[#allocation2 + $0x58] sm:$0xff]
    %v55 = vld [vmem:[#allocation2 + $0x60] sm:$0xff]
    %v56 = vld [vmem:[#allocation2 + $0x68] sm:$0xff]
    %v57 = vld [vmem:[#allocation2 + $0x70] sm:$0xff]
    %v58 = vld [vmem:[#allocation2 + $0x78] sm:$0xff]
    %v59 = vld [vmem:[#allocation2 + $0x80] sm:$0xff]
    %v60 = vld [vmem:[#allocation2 + $0x88] sm:$0xff]
    %v61 = vld [vmem:[#allocation5] sm:$0xff]
    %v62 = vld [vmem:[#allocation5 + $0x8] sm:$0xff]
    %v63 = vld [vmem:[#allocation5 + $0x10] sm:$0xff]
    %v64 = vld [vmem:[#allocation5 + $0x18] sm:$0xff]
    %v65 = vld [vmem:[#allocation5 + $0x20] sm:$0xff]
    %v66 = vld [vmem:[#allocation5 + $0x28] sm:$0xff]
    %v67 = vld [vmem:[#allocation5 + $0x30] sm:$0xff]
    %v68 = vld [vmem:[#allocation5 + $0x38] sm:$0xff]
    %v69 = vld [vmem:[#allocation5 + $0x40] sm:$0xff]
    %v70 = vld [vmem:[#allocation5 + $0x48] sm:$0xff]
    %v71 = vld [vmem:[#allocation5 + $0x50] sm:$0xff]
    %v72 = vld [vmem:[#allocation5 + $0x58] sm:$0xff]
    %v73 = vld [vmem:[#allocation5 + $0x60] sm:$0xff]
    %v74 = vld [vmem:[#allocation5 + $0x68] sm:$0xff]
    %v75 = vld [vmem:[#allocation5 + $0x70] sm:$0xff]
    %v76 = vld [vmem:[#allocation5 + $0x78] sm:$0xff]
    %v77 = vld [vmem:[#allocation5 + $0x80] sm:$0xff]
    %v78 = vld [vmem:[#allocation5 + $0x88] sm:$0xff]
    %v79 = vld [vmem:[#allocation5 + $0x90] sm:$0xff]
    %v80 = vld [vmem:[#allocation5 + $0x98] sm:$0xff]
    %v81 = vld [vmem:[#allocation5 + $0xa0] sm:$0xff]
    %v82 = vld [vmem:[#allocation5 + $0xa8] sm:$0xff]
    %v83 = vld [vmem:[#allocation5 + $0xb0] sm:$0xff]
    %v84 = vld [vmem:[#allocation5 + $0xb8] sm:$0xff]
    %v85 = vld [vmem:[#allocation5 + $0xc0] sm:$0xff]
    %v86 = vld [vmem:[#allocation5 + $0xc8] sm:$0xff]
    %v87 = vld [vmem:[#allocation5 + $0xd0] sm:$0xff]
    %v88 = vld [vmem:[#allocation5 + $0xd8] sm:$0xff]
    %v89 = vld [vmem:[#allocation5 + $0xe0] sm:$0xff]
    %v90 = vld [vmem:[#allocation5 + $0xe8] sm:$0xff]
    %v91 = vld [vmem:[#allocation5 + $0xf0] sm:$0xff]
    %v92 = vld [vmem:[#allocation5 + $0xf8] sm:$0xff]
    %v93 = vld [vmem:[%s2] sm:$0x1]
    %v95 = vlaneseq
    %v96 = vshrl.u32 %v95, 7
    %v97 = vsub.s32 0, %v96
    %v98 = vrot.slane %v93, %v97
    %100 = vmatprep.subr.mxu0 0.0
    %101 = vmatpush1.msra.mxu0 %v61
    %102 = vmatprep.subr.mxu0 0.0
    %103 = vmatpush1.msra.mxu0 %v62
    %104 = vmatprep.subr.mxu0 0.0
    %105 = vmatpush1.msra.mxu0 %v63
    %106 = vmatprep.subr.mxu0 0.0
    %107 = vmatpush1.msra.mxu0 %v64
    %108 = vmatprep.subr.mxu0 0.0
    %109 = vmatpush1.msra.mxu0 %v65
    %110 = vmatprep.subr.mxu0 0.0
    %111 = vmatpush1.msra.mxu0 %v66
    %112 = vmatprep.subr.mxu0 0.0
    %113 = vmatpush1.msra.mxu0 %v67
    %114 = vmatprep.subr.mxu0 0.0
    %115 = vmatpush1.msra.mxu0 %v68
    %116 = vmatprep.subr.mxu0 0.0
    %117 = vmatpush1.msra.mxu0 %v69
    %118 = vmatprep.subr.mxu0 0.0
    %119 = vmatpush1.msra.mxu0 %v70
    %120 = vmatprep.subr.mxu0 0.0
    %121 = vmatpush1.msra.mxu0 %v71
    %122 = vmatprep.subr.mxu0 0.0
    %123 = vmatpush1.msra.mxu0 %v72
    %124 = vmatprep.subr.mxu0 0.0
    %125 = vmatpush1.msra.mxu0 %v73
    %126 = vmatprep.subr.mxu0 0.0
    %127 = vmatpush1.msra.mxu0 %v74
    %128 = vmatprep.subr.mxu0 0.0
    %129 = vmatpush1.msra.mxu0 %v75
    %130 = vmatprep.subr.mxu0 0.0
    %131 = vmatpush1.msra.mxu0 %v76
    %132 = vmatprep.subr.mxu0 0.0
    %133 = vmatpush1.msra.mxu0 %v77
    %134 = vmatprep.subr.mxu0 0.0
    %135 = vmatpush1.msra.mxu0 %v78
    %136 = vmatprep.subr.mxu0 0.0
    %137 = vmatpush1.msra.mxu0 %v79
    %138 = vmatprep.subr.mxu0 0.0
    %139 = vmatpush1.msra.mxu0 %v80
    %140 = vmatprep.subr.mxu0 0.0
    %141 = vmatpush1.msra.mxu0 %v81
    %142 = vmatprep.subr.mxu0 0.0
    %143 = vmatpush1.msra.mxu0 %v82
    %144 = vmatprep.subr.mxu0 0.0
    %145 = vmatpush1.msra.mxu0 %v83
    %146 = vmatprep.subr.mxu0 0.0
    %147 = vmatpush1.msra.mxu0 %v84
    %148 = vmatprep.subr.mxu0 0.0
    %149 = vmatpush1.msra.mxu0 %v85
    %150 = vmatprep.subr.mxu0 0.0
    %151 = vmatpush1.msra.mxu0 %v86
    %152 = vmatprep.subr.mxu0 0.0
    %153 = vmatpush1.msra.mxu0 %v87
    %154 = vmatprep.subr.mxu0 0.0
    %155 = vmatpush1.msra.mxu0 %v88
    %156 = vmatprep.subr.mxu0 0.0
    %157 = vmatpush1.msra.mxu0 %v89
    %158 = vmatprep.subr.mxu0 0.0
    %159 = vmatpush1.msra.mxu0 %v90
    %160 = vmatprep.subr.mxu0 0.0
    %161 = vmatpush1.msra.mxu0 %v91
    %162 = vmatprep.subr.mxu0 0.0
    %163 = vmatpush1.msra.mxu0 %v92
    %164 = vmatprep.mubr.f32.mxu0 %v44
    %165 = vmatmul.mubr.f32.gmra.mrb[0].mxu0 %v43
    %v166 = vpop.f32.mrb[0].mxu0
    %v167 = vadd.f32 %v98, %v166
    %v168 = vpop.f32.mrb[0].mxu0
    %169 = vmatprep.mubr.f32.mxu0 %v46
    %170 = vmatmul.mubr.f32.gmra.mrb[0].mxu0 %v45
    %v171 = vpop.f32.mrb[0].mxu0
    %v172 = vadd.f32 %v98, %v171
    %v173 = vpop.f32.mrb[0].mxu0
    %174 = vmatprep.mubr.f32.mxu0 %v48
    %175 = vmatmul.mubr.f32.gmra.mrb[0].mxu0 %v47
    %v176 = vpop.f32.mrb[0].mxu0
    %v177 = vadd.f32 %v98, %v176
    %v178 = vpop.f32.mrb[0].mxu0
    %179 = vmatprep.mubr.f32.mxu0 %v50
    %180 = vmatmul.mubr.f32.gmra.mrb[0].mxu0 %v49
    %v181 = vpop.f32.mrb[0].mxu0
    %v182 = vadd.f32 %v98, %v181
    %v183 = vpop.f32.mrb[0].mxu0
    %184 = vmatprep.mubr.f32.mxu0 %v52
    %185 = vmatmul.mubr.f32.gmra.mrb[0].mxu0 %v51
    %v186 = vpop.f32.mrb[0].mxu0
    %v187 = vadd.f32 %v98, %v186
    %v188 = vpop.f32.mrb[0].mxu0
    %189 = vmatprep.mubr.f32.mxu0 %v54
    %190 = vmatmul.mubr.f32.gmra.mrb[0].mxu0 %v53
    %v191 = vpop.f32.mrb[0].mxu0
    %v192 = vadd.f32 %v98, %v191
    %v193 = vpop.f32.mrb[0].mxu0
    %194 = vmatprep.mubr.f32.mxu0 %v56
    %195 = vmatmul.mubr.f32.gmra.mrb[0].mxu0 %v55
    %v196 = vpop.f32.mrb[0].mxu0
    %v197 = vadd.f32 %v98, %v196
    %v198 = vpop.f32.mrb[0].mxu0
    %199 = vmatprep.mubr.f32.mxu0 %v58
    %200 = vmatmul.mubr.f32.gmra.mrb[0].mxu0 %v57
    %v201 = vpop.f32.mrb[0].mxu0
    %v202 = vadd.f32 %v98, %v201
    %v203 = vpop.f32.mrb[0].mxu0
    %204 = vmatprep.mubr.f32.mxu0 %v60
    %205 = vmatmul.mubr.f32.gmra.mrb[0].mxu0 %v59
    %v206 = vpop.f32.mrb[0].mxu0
    %v207 = vadd.f32 %v98, %v206
    %v208 = vpop.f32.mrb[0].mxu0
    %209 = vdwg.mxu0
    %v210 = vmul.f32 %v167, %v167
    %v211 = vmul.f32 %v172, %v172
    %v212 = vmul.f32 %v177, %v177
    %v213 = vmul.f32 %v182, %v182
    %v214 = vmul.f32 %v187, %v187
    %v215 = vmul.f32 %v192, %v192
    %v216 = vmul.f32 %v197, %v197
    %v217 = vmul.f32 %v202, %v202
    %v218 = vmul.f32 %v207, %v207
    %219 = vadd.xlane.f32.xlu0 %v210
    %v220 = vpop.xlane.xlu0 %219
    %221 = vadd.xlane.f32.xlu0 %v211
    %v222 = vpop.xlane.xlu0 %221
    %223 = vadd.xlane.f32.xlu0 %v212
    %v224 = vpop.xlane.xlu0 %223
    %225 = vadd.xlane.f32.xlu0 %v213
    %v226 = vpop.xlane.xlu0 %225
    %227 = vadd.xlane.f32.xlu0 %v214
    %v228 = vpop.xlane.xlu0 %227
    %229 = vadd.xlane.f32.xlu0 %v215
    %v230 = vpop.xlane.xlu0 %229
    %231 = vadd.xlane.f32.xlu0 %v216
    %v232 = vpop.xlane.xlu0 %231
    %233 = vadd.xlane.f32.xlu0 %v217
    %v234 = vpop.xlane.xlu0 %233
    %235 = vadd.xlane.f32.xlu0 %v218
    %v236 = vpop.xlane.xlu0 %235
    %v237 = vrsqrt.pop %v220
    %v238 = vmul.f32 %v220, %v237
    %vm239 = vcmp.eq.f32.partialorder %v220, inf
    %v240 = vsel %vm239, %v220, %v238
    %vm241 = vcmp.eq.f32.partialorder %v220, 0.0
    %v242 = vand.u32 %v220, 2147483648
    %v243 = vsel %vm241, %v242, %v240
    %v244 = vrsqrt.pop %v222
    %v245 = vmul.f32 %v222, %v244
    %vm246 = vcmp.eq.f32.partialorder %v222, inf
    %v247 = vsel %vm246, %v222, %v245
    %vm248 = vcmp.eq.f32.partialorder %v222, 0.0
    %v249 = vand.u32 %v222, 2147483648
    %v250 = vsel %vm248, %v249, %v247
    %v251 = vrsqrt.pop %v224
    %v252 = vmul.f32 %v224, %v251
    %vm253 = vcmp.eq.f32.partialorder %v224, inf
    %v254 = vsel %vm253, %v224, %v252
    %vm255 = vcmp.eq.f32.partialorder %v224, 0.0
    %v256 = vand.u32 %v224, 2147483648
    %v257 = vsel %vm255, %v256, %v254
    %v258 = vrsqrt.pop %v226
    %v259 = vmul.f32 %v226, %v258
    %vm260 = vcmp.eq.f32.partialorder %v226, inf
    %v261 = vsel %vm260, %v226, %v259
    %vm262 = vcmp.eq.f32.partialorder %v226, 0.0
    %v263 = vand.u32 %v226, 2147483648
    %v264 = vsel %vm262, %v263, %v261
    %v265 = vrsqrt.pop %v228
    %v266 = vmul.f32 %v228, %v265
    %vm267 = vcmp.eq.f32.partialorder %v228, inf
    %v268 = vsel %vm267, %v228, %v266
    %vm269 = vcmp.eq.f32.partialorder %v228, 0.0
    %v270 = vand.u32 %v228, 2147483648
    %v271 = vsel %vm269, %v270, %v268
    %v272 = vrsqrt.pop %v230
    %v273 = vmul.f32 %v230, %v272
    %vm274 = vcmp.eq.f32.partialorder %v230, inf
    %v275 = vsel %vm274, %v230, %v273
    %vm276 = vcmp.eq.f32.partialorder %v230, 0.0
    %v277 = vand.u32 %v230, 2147483648
    %v278 = vsel %vm276, %v277, %v275
    %v279 = vrsqrt.pop %v232
    %v280 = vmul.f32 %v232, %v279
    %vm281 = vcmp.eq.f32.partialorder %v232, inf
    %v282 = vsel %vm281, %v232, %v280
    %vm283 = vcmp.eq.f32.partialorder %v232, 0.0
    %v284 = vand.u32 %v232, 2147483648
    %v285 = vsel %vm283, %v284, %v282
    %v286 = vrsqrt.pop %v234
    %v287 = vmul.f32 %v234, %v286
    %vm288 = vcmp.eq.f32.partialorder %v234, inf
    %v289 = vsel %vm288, %v234, %v287
    %vm290 = vcmp.eq.f32.partialorder %v234, 0.0
    %v291 = vand.u32 %v234, 2147483648
    %v292 = vsel %vm290, %v291, %v289
    %v293 = vrsqrt.pop %v236
    %v294 = vmul.f32 %v236, %v293
    %vm295 = vcmp.eq.f32.partialorder %v236, inf
    %v296 = vsel %vm295, %v236, %v294
    %vm297 = vcmp.eq.f32.partialorder %v236, 0.0
    %v298 = vand.u32 %v236, 2147483648
    %v299 = vsel %vm297, %v298, %v296
    %v300 = vadd.f32 %v243, 1e-08
    %v301 = vadd.f32 %v250, 1e-08
    %v302 = vadd.f32 %v257, 1e-08
    %v303 = vadd.f32 %v264, 1e-08
    %v304 = vadd.f32 %v271, 1e-08
    %v305 = vadd.f32 %v278, 1e-08
    %v306 = vadd.f32 %v285, 1e-08
    %v307 = vadd.f32 %v292, 1e-08
    %v308 = vadd.f32 %v299, 1e-08
    %v309 = vrcp.pop %v300
    %v310 = vrcp.pop %v301
    %v311 = vrcp.pop %v302
    %v312 = vrcp.pop %v303
    %v313 = vrcp.pop %v304
    %v314 = vrcp.pop %v305
    %v315 = vrcp.pop %v306
    %v316 = vrcp.pop %v307
    %v317 = vrcp.pop %v308
    %v318 = vmul.f32 %v167, %v309
    %v319 = vmul.f32 %v172, %v310
    %v320 = vmul.f32 %v177, %v311
    %v321 = vmul.f32 %v182, %v312
    %v322 = vmul.f32 %v187, %v313
    %v323 = vmul.f32 %v192, %v314
    %v324 = vmul.f32 %v197, %v315
    %v325 = vmul.f32 %v202, %v316
    %v326 = vmul.f32 %v207, %v317
    %327 = vst [vmem:[#allocation7] sm:$0xff] %v318
    %328 = vst [vmem:[#allocation7 + $0x8] sm:$0xff] %v319
    %329 = vst [vmem:[#allocation7 + $0x10] sm:$0xff] %v320
    %330 = vst [vmem:[#allocation7 + $0x18] sm:$0xff] %v321
    %331 = vst [vmem:[#allocation7 + $0x20] sm:$0xff] %v322
    %332 = vst [vmem:[#allocation7 + $0x28] sm:$0xff] %v323
    %333 = vst [vmem:[#allocation7 + $0x30] sm:$0xff] %v324
    %334 = vst [vmem:[#allocation7 + $0x38] sm:$0xff] %v325
    %335 = vst [vmem:[#allocation7 + $0x40] sm:$0xff] %v326
    // Predicated region
    $region22: #{tpu_custom_call.1} parent=1 // pred_check
      _
    $region23: #{tpu_custom_call.1} parent=1 // pred_check_branch
      %337 = sbr.rel (0) target = $region25
    $region24: #{tpu_custom_call.1} parent=1 // pred_region
      %s339 = ssub.s32 1152, 1152
      %340 = vsyncadd [#allocation4], %s339
      %s341 = sshll.u32 [#allocation7], 4
      %s342 = int_to_ptr.vmem [resolvable:$true] %s341
      %347 = dma.vmem_to_hbm [thread:$0]  %s342, 1152, %s3, [#allocation4], 128, 128, 8
    $region25: #{tpu_custom_call.1} parent=1 // pred_fallthru
      _
    // Predicated region
    $region26: #{tpu_custom_call.1} parent=1 // pred_check
      _
    $region27: #{tpu_custom_call.1} parent=1 // pred_check_branch
      %349 = sbr.rel (0) target = $region29
    $region28: #{tpu_custom_call.1} parent=1 // pred_region
      %350 = dma.done [#allocation4], 1152
    $region29: #{tpu_custom_call.1} parent=1 // pred_fallthru
      _
    %351 = vsyncpa [#allocation3], 1
    %352 = vsyncpa [#allocation6], 1
    %353 = vsyncpa [#allocation4], 1

</llo_original>
